<compile_context>
chip_gen: v7x
topology: tpu7x:2x2x1
jax: 0.10.0
libtpu: 0.0.40
codegen_flags: <defaults>
</compile_context>

<pallas_src>
import functools

import jax
import jax.numpy as jnp
from jax.experimental import pallas as pl
from jax.experimental.pallas import tpu as pltpu


_LANE = 128
_MAX_BATCH_TILE = 512


def _round_up(x, m):
    return ((x + m - 1) // m) * m


def _cdiv(a, b):
    return -(-a // b)


# --------------------------------------------------- generation-aware budgets --

def _vmem_budget_bytes():
    """Returns (footprint target, vmem_limit cap), generation aware."""
    cap = None
    try:
        info = pltpu.get_tpu_info()
        for name in ("vmem_capacity_bytes", "vmem_bytes", "vmem_size_bytes"):
            cap = getattr(info, name, None)
            if cap:
                break
    except Exception:
        cap = None
    if not cap:
        cap = 64 * 1024 * 1024                       # conservative (v7x per-TC)
    if cap >= 96 * 1024 * 1024:                      # v5e / v6e: 128 MiB VMEM
        return 72 * 1024 * 1024, 100 * 1024 * 1024
    return 28 * 1024 * 1024, 50 * 1024 * 1024        # v7x: 64 MiB per TensorCore


def _is_multi_tensorcore():
    """True only for multi-TensorCore chips (v7x) — gates the 2-way batch split."""
    try:
        kind = jax.devices()[0].device_kind.lower()
    except Exception:
        return False
    return ("v7" in kind) or ("7x" in kind)


def _footprint_bytes(tb, tk, ncols, nct, itemsize, with_acc):
    f = (2 * tb * tk * itemsize          # x block       (double-buffered)
         + 2 * tk * ncols * itemsize     # weight block  (double-buffered)
         + 2 * 8 * ncols * 4             # dendrite bias (double-buffered)
         + 4 * 8 * nct * 4               # lw + lb
         + 2 * tb * nct * 4)             # output block  (double-buffered)
    if with_acc:
        f += tb * ncols * 4              # f32 accumulator scratch
    return f + (1 << 20)                 # fudge for Mosaic internals


# ------------------------------------------------------------------ kernels --

def _epilogue(dend, lw_ref, lb_ref, o_ref, *, strategy, nct, nd):
    if strategy == "maxpool":
        # max over dendrites of each cell: columns are grouped per dendrite and
        # nct is a multiple of 128, so every slice is lane-aligned.
        out = dend[:, 0:nct]
        for d in range(1, nd):
            out = jnp.maximum(out, dend[:, d * nct:(d + 1) * nct])
    else:  # local_linear
        lw = lw_ref[0]                                        # (nd, nct) f32
        out = dend[:, 0:nct] * lw[0:1, :]
        for d in range(1, nd):
            out = out + dend[:, d * nct:(d + 1) * nct] * lw[d:d + 1, :]
        out = out + lb_ref[0]
    o_ref[...] = out.astype(o_ref.dtype)


def _single_k_kernel(x_ref, w_ref, b_ref, *rest, strategy, nct, nd):
    # Common case: whole reduction in one step — no accumulator scratch at all.
    if strategy == "local_linear":
        lw_ref, lb_ref, o_ref = rest
    else:
        lw_ref = lb_ref = None
        (o_ref,) = rest
    acc = jnp.dot(x_ref[...], w_ref[...], preferred_element_type=jnp.float32)
    dend = jnp.maximum(acc + b_ref[0], 0.0)                   # ReLU (f32 VPU)
    _epilogue(dend, lw_ref, lb_ref, o_ref, strategy=strategy, nct=nct, nd=nd)


def _multi_k_kernel(x_ref, w_ref, b_ref, *rest, strategy, nct, nd):
    if strategy == "local_linear":
        lw_ref, lb_ref, o_ref, acc_ref = rest
    else:
        lw_ref = lb_ref = None
        o_ref, acc_ref = rest
    k = pl.program_id(2)
    part = jnp.dot(x_ref[...], w_ref[...], preferred_element_type=jnp.float32)

    @pl.when(k == 0)
    def _():
        acc_ref[...] = part                                   # no zero-init pass

    @pl.when(k != 0)
    def _():
        acc_ref[...] = acc_ref[...] + part

    @pl.when(k == pl.num_programs(2) - 1)
    def _():
        dend = jnp.maximum(acc_ref[...] + b_ref[0], 0.0)
        _epilogue(dend, lw_ref, lb_ref, o_ref, strategy=strategy, nct=nct, nd=nd)


# ----------------------------------------------------- one-time param packing --

def pack_params(params, *, n_cells, n_dendrites, mxu_dtype=jnp.float32,
                _force_tk=None, _force_nct=None):
    """One-time packing of layer params into the kernel layout (hoisted out of
    the per-call path).  `_force_*` are test-only overrides (multiples of 128)."""
    w = jnp.asarray(params["w_dend"])            # (n_cells*n_dendrites, d_in)
    b = jnp.asarray(params["b_dend"], jnp.float32)
    total, d_in = w.shape
    assert total == n_cells * n_dendrites
    nd = n_dendrites

    itemsize = jnp.dtype(mxu_dtype).itemsize
    k_align = 256 if itemsize == 2 else 128      # 256-aligned K tiles for bf16
    vmem_target, _ = _vmem_budget_bytes()
    tb_ref = 256                                 # keep >=256-row batch tiles viable

    # --- cell-block (N) tile: as wide as possible while a 256-row batch tile
    #     and at least one k_align of K still fit the VMEM target -------------
    nc_p = _round_up(n_cells, _LANE)
    if _force_nct is not None:
        nct = _force_nct
    else:
        n_try = 1
        while True:
            nct = _round_up(_cdiv(nc_p, n_try), _LANE)
            if nct == _LANE or _footprint_bytes(
                    tb_ref, k_align, nd * nct, nct, itemsize, True) <= vmem_target:
                break
            n_try += 1
    n_nt = _cdiv(nc_p, nct)
    ncells_p = n_nt * nct
    ncols = nd * nct

    # --- K tile: as deep as fits; single unpadded step when possible ---------
    base = _footprint_bytes(tb_ref, 0, ncols, nct, itemsize, True)
    per_k = 2 * (tb_ref + ncols) * itemsize
    tk_budget = max((vmem_target - base) // per_k, k_align)
    tk_budget = max((tk_budget // k_align) * k_align, k_align)
    if _force_tk is not None:
        tk_budget = min(tk_budget, _force_tk)
    if d_in <= tk_budget:
        tk, dk_p, n_k = d_in, d_in, 1            # single K step, zero K padding
    else:
        d_al = _round_up(d_in, k_align)
        n_k = _cdiv(d_al, tk_budget)
        tk = _round_up(_cdiv(d_al, n_k), k_align)
        dk_p = tk * n_k                          # overshoot bounded (~k_align/step)

    # --- pack weight / biases (zero-padded cells & K) -------------------------
    # column layout: j*(nd*nct) + d*nct + c_local, cell = j*nct + c_local
    w_t = w.T.reshape(d_in, n_cells, nd)
    w_t = jnp.pad(w_t, ((0, dk_p - d_in), (0, ncells_p - n_cells), (0, 0)))
    w_t = w_t.reshape(dk_p, n_nt, nct, nd).transpose(0, 1, 3, 2)
    w_t = w_t.reshape(dk_p, n_nt * ncols).astype(mxu_dtype)

    b_t = jnp.pad(b.reshape(n_cells, nd), ((0, ncells_p - n_cells), (0, 0)))
    b_t = b_t.reshape(n_nt, nct, nd).transpose(0, 2, 1).reshape(n_nt, 1, ncols)
    b_t = b_t.astype(jnp.float32)

    lw = jnp.asarray(params["lw"], jnp.float32)        # (n_cells, nd)
    lb = jnp.asarray(params["lb"], jnp.float32)        # (n_cells,)
    lw_t = jnp.pad(lw, ((0, ncells_p - n_cells), (0, 0)))
    lw_t = lw_t.reshape(n_nt, nct, nd).transpose(0, 2, 1)      # (n_nt, nd, nct)
    lb_t = jnp.pad(lb, (0, ncells_p - n_cells)).reshape(n_nt, 1, nct)

    return dict(w_t=w_t, b_t=b_t, lw_t=lw_t, lb_t=lb_t,
                d_in=d_in, dk_p=dk_p, tk=tk, n_k=n_k,
                n_cells=n_cells, nct=nct, n_nt=n_nt, n_dendrites=nd)


# ------------------------------------------------------------------ wrapper --

def active_dendrite_layer(x, packed, *, strategy="maxpool"):
    """Forward pass of ActiveDendriteLayer. x: (B, d_in) -> (B, n_cells) f32."""
    B, d_in = x.shape
    assert d_in == packed["d_in"]
    nc, nct, n_nt = packed["n_cells"], packed["nct"], packed["n_nt"]
    nd = packed["n_dendrites"]
    tk, dk_p, n_k = packed["tk"], packed["dk_p"], packed["n_k"]
    ncols = nd * nct
    mxu_dtype = packed["w_t"].dtype
    itemsize = jnp.dtype(mxu_dtype).itemsize
    single_k = (n_k == 1)

    vmem_target, vmem_cap = _vmem_budget_bytes()

    # --- batch tiling: biggest tile that fits; split only when worthwhile ----
    gran = 16 if itemsize == 2 else 8            # bf16 packs 2 rows per sublane
    b_al = _round_up(max(B, 1), gran)
    tb = min(_MAX_BATCH_TILE, b_al)
    while tb > gran and _footprint_bytes(tb, tk, ncols, nct, itemsize,
                                         not single_k) > vmem_target:
        tb = _round_up(max(tb // 2, gran), gran)
    n_b = _cdiv(b_al, tb)
    if _is_multi_tensorcore() and n_b == 1 and b_al >= 2 * 256:
        n_b = 2                                  # both v7x TCs get >=256 real rows
    tb = _round_up(_cdiv(b_al, n_b), gran)       # rebalance -> minimal padding
    bp = n_b * tb

    # --- input cast/pad only when actually needed -----------------------------
    x_in = x if x.dtype == mxu_dtype else x.astype(mxu_dtype)
    if bp != B or dk_p != d_in:
        x_in = jnp.pad(x_in, ((0, bp - B), (0, dk_p - d_in)))

    grid = (n_b, n_nt, n_k)
    x_spec = pl.BlockSpec((tb, tk), lambda i, j, k: (i, k))
    w_spec = pl.BlockSpec((tk, ncols), lambda i, j, k: (k, j))
    b_spec = pl.BlockSpec((1, 1, ncols), lambda i, j, k: (j, 0, 0))
    o_spec = pl.BlockSpec((tb, nct), lambda i, j, k: (i, j))
    out_shape = jax.ShapeDtypeStruct((bp, n_nt * nct), jnp.float32)
    scratch = [] if single_k else [pltpu.VMEM((tb, ncols), jnp.float32)]

    footprint = _footprint_bytes(tb, tk, ncols, nct, itemsize, not single_k)
    vmem_limit = int(min(max(footprint + (16 << 20), 32 << 20), vmem_cap))
    cparams = pltpu.CompilerParams(
        dimension_semantics=("parallel", "arbitrary", "arbitrary"),
        vmem_limit_bytes=vmem_limit)

    kern = _single_k_kernel if single_k else _multi_k_kernel
    kernel = functools.partial(kern, strategy=strategy, nct=nct, nd=nd)

    if strategy == "maxpool":
        in_specs = [x_spec, w_spec, b_spec]
        args = (x_in, packed["w_t"], packed["b_t"])
    elif strategy == "local_linear":
        lw_spec = pl.BlockSpec((1, nd, nct), lambda i, j, k: (j, 0, 0))
        lb_spec = pl.BlockSpec((1, 1, nct), lambda i, j, k: (j, 0, 0))
        in_specs = [x_spec, w_spec, b_spec, lw_spec, lb_spec]
        args = (x_in, packed["w_t"], packed["b_t"], packed["lw_t"], packed["lb_t"])
    else:
        raise ValueError(strategy)

    out = pl.pallas_call(
        kernel, grid=grid,
        in_specs=in_specs, out_specs=o_spec, out_shape=out_shape,
        scratch_shapes=scratch, compiler_params=cparams,
    )(*args)

    return out[:B, :nc]


# ------------------------------------------------------- params & reference --

def init_params(key, input_dim, n_cells, n_dendrites, sparsity=0.3):
    total = n_cells * n_dendrites
    k_w, k_b, k_m, k_lw, k_lb = jax.random.split(key, 5)

    bound = 1.0 / jnp.sqrt(float(input_dim))
    w = jax.random.uniform(k_w, (total, input_dim), jnp.float32, -bound, bound)
    b = jax.random.uniform(k_b, (total,), jnp.float32, -bound, bound)

    # SparseWeights: zero a `sparsity` fraction of each output unit's incoming
    # weights (forward pass of SparseWeights == masked Linear).
    k_zero = int(round(sparsity * input_dim))
    u = jax.random.uniform(k_m, (total, input_dim))
    ranks = jnp.argsort(jnp.argsort(u, axis=1), axis=1)
    mask = (ranks >= k_zero).astype(jnp.float32)
    w = w * mask

    # LocalLinear params (one Linear(n_dendrites, 1) per cell).
    lbound = 1.0 / jnp.sqrt(float(n_dendrites))
    lw = jax.random.uniform(k_lw, (n_cells, n_dendrites), jnp.float32, -lbound, lbound)
    lb = jax.random.uniform(k_lb, (n_cells,), jnp.float32, -lbound, lbound)

    return {"w_dend": w, "b_dend": b, "lw": lw, "lb": lb}


def reference(x, params, *, n_cells, n_dendrites, strategy):
    dend = jnp.maximum(x @ params["w_dend"].T + params["b_dend"], 0.0)
    d3 = dend.reshape(-1, n_cells, n_dendrites)
    if strategy == "maxpool":
        return d3.max(axis=2)
    return jnp.einsum("bcd,cd->bc", d3, params["lw"]) + params["lb"]


# --------------------------------------------------------------------- main --

if __name__ == "__main__":
    key = jax.random.PRNGKey(0)
    kx1, kp1, kx2, kp2 = jax.random.split(key, 4)
    ok = True

    # Config A: tiny shapes — single-K fast path, f32 and bf16 MXU operands.
    x1 = jax.random.normal(kx1, (2, 32), jnp.float32)
    p1 = init_params(kp1, 32, 16, 4, sparsity=0.3)
    for mxu_dtype, tol in ((jnp.float32, 2e-2), (jnp.bfloat16, 5e-2)):
        packed = pack_params(p1, n_cells=16, n_dendrites=4, mxu_dtype=mxu_dtype)
        for strategy in ("maxpool", "local_linear"):
            out = jax.block_until_ready(
                active_dendrite_layer(x1, packed, strategy=strategy))
            ref = reference(x1, p1, n_cells=16, n_dendrites=4, strategy=strategy)
            if out.shape != ref.shape or not jnp.allclose(out, ref, atol=tol, rtol=tol):
                ok = False

    # Config B: force the multi-K accumulation path and cell-block (N) tiling.
    x2 = jax.random.normal(kx2, (40, 384), jnp.float32)
    p2 = init_params(kp2, 384, 200, 3, sparsity=0.3)
    packed2 = pack_params(p2, n_cells=200, n_dendrites=3, mxu_dtype=jnp.float32,
                          _force_tk=128, _force_nct=128)
    for strategy in ("maxpool", "local_linear"):
        out = jax.block_until_ready(
            active_dendrite_layer(x2, packed2, strategy=strategy))
        ref = reference(x2, p2, n_cells=200, n_dendrites=3, strategy=strategy)
        if out.shape != ref.shape or not jnp.allclose(out, ref, atol=2e-2, rtol=2e-2):
            ok = False

    if ok:
        print("KERNEL_OK")
</pallas_src>

<mosaic_0001>
module attributes {stable_mosaic.version = 11 : i64} {
  func.func @_single_k_kernel(%arg0: i32, %arg1: i32, %arg2: i32, %arg3: memref<8x32xf32, #tpu.memory_space<vmem>>, %arg4: memref<32x512xf32, #tpu.memory_space<vmem>>, %arg5: memref<1x1x512xf32, #tpu.memory_space<vmem>>, %arg6: memref<8x128xf32, #tpu.memory_space<vmem>>) attributes {dimension_semantics = [#tpu.dimension_semantics<parallel>, #tpu.dimension_semantics<arbitrary>, #tpu.dimension_semantics<arbitrary>], iteration_bounds = array<i64: 1, 1, 1>, scalar_prefetch = 0 : i64, scratch_operands = 0 : i64, tpu.core_type = #tpu.core_type<tc>, window_params = [{transform_indices = @transform_0, window_bounds = array<i64: 8, 32>}, {transform_indices = @transform_1, window_bounds = array<i64: 32, 512>}, {transform_indices = @transform_2, window_bounds = array<i64: 1, 1, 512>}, {transform_indices = @transform_3, window_bounds = array<i64: 8, 128>}]} {
    %c0 = arith.constant 0 : index
    %c0_0 = arith.constant 0 : index
    %0 = vector.load %arg3[%c0, %c0_0] : memref<8x32xf32, #tpu.memory_space<vmem>>, vector<8x32xf32>
    %c0_1 = arith.constant 0 : index
    %c0_2 = arith.constant 0 : index
    %1 = vector.load %arg4[%c0_1, %c0_2] : memref<32x512xf32, #tpu.memory_space<vmem>>, vector<32x512xf32>
    %cst = arith.constant dense<0.000000e+00> : vector<8x512xf32>
    %2 = tpu.matmul %0, %1, %cst {dimension_numbers = #tpu.dot_dimension_numbers<[1], [0], [0], [1], [0, 0, 1, 1], [], []>} : vector<8x32xf32>, vector<32x512xf32>, vector<8x512xf32> -> vector<8x512xf32>
    %c0_3 = arith.constant 0 : index
    %c0_4 = arith.constant 0 : index
    %c0_5 = arith.constant 0 : index
    %3 = vector.load %arg5[%c0_3, %c0_4, %c0_5] : memref<1x1x512xf32, #tpu.memory_space<vmem>>, vector<1x1x512xf32>
    %4 = vector.shape_cast %3 : vector<1x1x512xf32> to vector<1x512xf32>
    %5 = vector.broadcast %4 : vector<1x512xf32> to vector<8x512xf32>
    %6 = arith.addf %2, %5 : vector<8x512xf32>
    %cst_6 = arith.constant 0.000000e+00 : f32
    %7 = vector.broadcast %cst_6 : f32 to vector<8x512xf32>
    %8 = arith.maximumf %6, %7 : vector<8x512xf32>
    %9 = vector.extract_strided_slice %8 {offsets = [0, 0], sizes = [8, 128], strides = [1, 1]} : vector<8x512xf32> to vector<8x128xf32>
    %10 = vector.extract_strided_slice %8 {offsets = [0, 128], sizes = [8, 128], strides = [1, 1]} : vector<8x512xf32> to vector<8x128xf32>
    %11 = arith.maximumf %9, %10 : vector<8x128xf32>
    %12 = vector.extract_strided_slice %8 {offsets = [0, 256], sizes = [8, 128], strides = [1, 1]} : vector<8x512xf32> to vector<8x128xf32>
    %13 = arith.maximumf %11, %12 : vector<8x128xf32>
    %14 = vector.extract_strided_slice %8 {offsets = [0, 384], sizes = [8, 128], strides = [1, 1]} : vector<8x512xf32> to vector<8x128xf32>
    %15 = arith.maximumf %13, %14 : vector<8x128xf32>
    %c0_7 = arith.constant 0 : index
    %c0_8 = arith.constant 0 : index
    %16 = vector.load %arg6[%c0_7, %c0_8] : memref<8x128xf32, #tpu.memory_space<vmem>>, vector<8x128xf32>
    tpu.vector_store %arg6[%c0_7, %c0_8], %15 {strides = array<i32>} : memref<8x128xf32, #tpu.memory_space<vmem>>, vector<8x128xf32>,
    return
  }
  func.func @transform_0(%arg0: i32, %arg1: i32, %arg2: i32) -> (i32, i32) {
    %c0_i32 = arith.constant 0 : i32
    return %arg0, %arg2 : i32, i32
  }
  func.func @transform_1(%arg0: i32, %arg1: i32, %arg2: i32) -> (i32, i32) {
    %c0_i32 = arith.constant 0 : i32
    return %arg2, %arg1 : i32, i32
  }
  func.func @transform_2(%arg0: i32, %arg1: i32, %arg2: i32) -> (i32, i32, i32) {
    %c0_i32 = arith.constant 0 : i32
    %c0_i32_0 = arith.constant 0 : i32
    %c0_i32_1 = arith.constant 0 : i32
    return %arg1, %c0_i32, %c0_i32_0 : i32, i32, i32
  }
  func.func @transform_3(%arg0: i32, %arg1: i32, %arg2: i32) -> (i32, i32) {
    %c0_i32 = arith.constant 0 : i32
    return %arg0, %arg1 : i32, i32
  }
}

</mosaic_0001>

<llo_original>
// kernel: tpu_custom_call.1
$region0: #{tpu_custom_call.1}
  #allocation0 [shape = 'u32[]', space=smem, size = 0x4, offset = 0x4, fixed_abs, tag = 'smem constant byte address 0x4 - core index']
  #allocation1 [shape = 'u32[144,128]{1,0:T(1,128)}', space=vmem, size = 0x12000, scoped, tag = 'internal scratch']
  %s0 = inlined_call_operand.hbm [shape: f32[8,32], index: 0, kind: input, shape index: {}]
  %s1 = inlined_call_operand.hbm [shape: f32[32,512], index: 1, kind: input, shape index: {}]
  %s2 = inlined_call_operand.vmem [shape: f32[1,1,512], index: 2, kind: input, shape index: {}]
  %s3 = inlined_call_operand.hbm [shape: f32[8,128], index: 3, kind: output, shape index: {}]
  %s4 = sld [smem:[#allocation0]]
  $region30: #{tpu_custom_call.1} parent=0
    _
  %s6 = ssub.s32 1, %s4
  %s7 = scalar_select 0, %s6, %s4
  $region1: #{tpu_custom_call.1} parent=0
    #allocation2 [shape = 'u8[4096]{0}', space=vmem, size = 0x1000, scoped, tag = 'input window, operand 0, single buffered']
    #allocation3 [shape = 's32[1]{0}', space=sflag, size = 0x4, scoped, tag = 'scoped memory for tpu_custom_call.1']
    #allocation4 [shape = 's32[1]{0}', space=sflag, size = 0x4, scoped, tag = 'scoped memory for tpu_custom_call.1']
    #allocation5 [shape = 'u8[65536]{0}', space=vmem, size = 0x10000, scoped, tag = 'input window, operand 1, single buffered']
    #allocation6 [shape = 's32[1]{0}', space=sflag, size = 0x4, scoped, tag = 'scoped memory for tpu_custom_call.1']
    #allocation7 [shape = 'u8[4096]{0}', space=vmem, size = 0x1000, scoped, tag = 'output window, operand 0, single buffered']
    %8 = vsyncpa [#allocation3], 0
    %9 = vsyncpa [#allocation6], 0
    %10 = vsyncpa [#allocation4], 0
    // Predicated region
    $region2: #{tpu_custom_call.1} parent=1 // pred_check
      _
    $region3: #{tpu_custom_call.1} parent=1 // pred_check_branch
      %12 = sbr.rel (0) target = $region5
    $region4: #{tpu_custom_call.1} parent=1 // pred_region
      %s14 = ssub.s32 128, 128
      %15 = vsyncadd [#allocation3], %s14
      %s17 = sshll.u32 [#allocation2], 4
      %s18 = int_to_ptr.vmem [resolvable:$true] %s17
      %20 = dma.hbm_to_vmem [thread:$0]  %s0, 128, %s18, [#allocation3]
    $region5: #{tpu_custom_call.1} parent=1 // pred_fallthru
      _
    // Predicated region
    $region6: #{tpu_custom_call.1} parent=1 // pred_check
      _
    $region7: #{tpu_custom_call.1} parent=1 // pred_check_branch
      %22 = sbr.rel (0) target = $region9
    $region8: #{tpu_custom_call.1} parent=1 // pred_region
      %s24 = ssub.s32 2048, 2048
      %25 = vsyncadd [#allocation6], %s24
      %s26 = sshll.u32 [#allocation5], 4
      %s27 = int_to_ptr.vmem [resolvable:$true] %s26
      %32 = dma.hbm_to_vmem [thread:$0]  %s1, 2048, %s27, [#allocation6], 512, 512, 32
    $region9: #{tpu_custom_call.1} parent=1 // pred_fallthru
      _
    // Predicated region
    $region10: #{tpu_custom_call.1} parent=1 // pred_check
      _
    $region11: #{tpu_custom_call.1} parent=1 // pred_check_branch
      %34 = sbr.rel (0) target = $region13
    $region12: #{tpu_custom_call.1} parent=1 // pred_region
      _
    $region13: #{tpu_custom_call.1} parent=1 // pred_fallthru
      _
    // Predicated region
    $region14: #{tpu_custom_call.1} parent=1 // pred_check
      _
    $region15: #{tpu_custom_call.1} parent=1 // pred_check_branch
      %36 = sbr.rel (0) target = $region17
    $region16: #{tpu_custom_call.1} parent=1 // pred_region
      %37 = dma.done [#allocation3], 128
    $region17: #{tpu_custom_call.1} parent=1 // pred_fallthru
      _
    // Predicated region
    $region18: #{tpu_custom_call.1} parent=1 // pred_check
      _
    $region19: #{tpu_custom_call.1} parent=1 // pred_check_branch
      %39 = sbr.rel (0) target = $region21
    $region20: #{tpu_custom_call.1} parent=1 // pred_region
      %40 = dma.done [#allocation6], 2048
    $region21: #{tpu_custom_call.1} parent=1 // pred_fallthru
      _
    %v41 = vld [vmem:[#allocation2] sm:$0xff]
    %v42 = vld [vmem:[#allocation5] sm:$0xff]
    %v43 = vld [vmem:[#allocation5 + $0x8] sm:$0xff]
    %v44 = vld [vmem:[#allocation5 + $0x10] sm:$0xff]
    %v45 = vld [vmem:[#allocation5 + $0x18] sm:$0xff]
    %v46 = vld [vmem:[#allocation5 + $0x20] sm:$0xff]
    %v47 = vld [vmem:[#allocation5 + $0x28] sm:$0xff]
    %v48 = vld [vmem:[#allocation5 + $0x30] sm:$0xff]
    %v49 = vld [vmem:[#allocation5 + $0x38] sm:$0xff]
    %v50 = vld [vmem:[#allocation5 + $0x40] sm:$0xff]
    %v51 = vld [vmem:[#allocation5 + $0x48] sm:$0xff]
    %v52 = vld [vmem:[#allocation5 + $0x50] sm:$0xff]
    %v53 = vld [vmem:[#allocation5 + $0x58] sm:$0xff]
    %v54 = vld [vmem:[#allocation5 + $0x60] sm:$0xff]
    %v55 = vld [vmem:[#allocation5 + $0x68] sm:$0xff]
    %v56 = vld [vmem:[#allocation5 + $0x70] sm:$0xff]
    %v57 = vld [vmem:[#allocation5 + $0x78] sm:$0xff]
    %v58 = vld [vmem:[%s2] sm:$0xf]
    %v60 = vlaneseq
    %v61 = vshrl.u32 %v60, 7
    %v62 = vsub.s32 0, %v61
    %v63 = vrot.slane %v58, %v62
    %v64 = vlaneseq
    %v65 = vshrl.u32 %v64, 7
    %v66 = vsub.s32 1, %v65
    %v67 = vrot.slane %v58, %v66
    %v68 = vlaneseq
    %v69 = vshrl.u32 %v68, 7
    %v70 = vsub.s32 2, %v69
    %v71 = vrot.slane %v58, %v70
    %v72 = vlaneseq
    %v73 = vshrl.u32 %v72, 7
    %v74 = vsub.s32 3, %v73
    %v75 = vrot.slane %v58, %v74
    %vm80 = vcmask 261120
    %v82 = vsel %vm80, %v41, 0
    %84 = vmatprep.subr.mxu0 %v43
    %85 = vmatpush1.msra.mxu0 %v42
    %86 = vmatprep.subr.mxu0 %v47
    %87 = vmatpush1.msra.mxu0 %v46
    %88 = vmatprep.subr.mxu0 %v51
    %89 = vmatpush1.msra.mxu0 %v50
    %90 = vmatprep.subr.mxu0 %v55
    %91 = vmatpush1.msra.mxu0 %v54
    %92 = vmatprep.subr.mxu0 0.0
    %93 = vmatpush1.msra.mxu0 0.0
    %94 = vmatprep.subr.mxu0 0.0
    %95 = vmatpush1.msra.mxu0 0.0
    %96 = vmatprep.subr.mxu0 0.0
    %97 = vmatpush1.msra.mxu0 0.0
    %98 = vmatprep.subr.mxu0 0.0
    %99 = vmatpush1.msra.mxu0 0.0
    %100 = vmatprep.subr.mxu0 0.0
    %101 = vmatpush1.msra.mxu0 0.0
    %102 = vmatprep.subr.mxu0 0.0
    %103 = vmatpush1.msra.mxu0 0.0
    %104 = vmatprep.subr.mxu0 0.0
    %105 = vmatpush1.msra.mxu0 0.0
    %106 = vmatprep.subr.mxu0 0.0
    %107 = vmatpush1.msra.mxu0 0.0
    %108 = vmatprep.subr.mxu0 0.0
    %109 = vmatpush1.msra.mxu0 0.0
    %110 = vmatprep.subr.mxu0 0.0
    %111 = vmatpush1.msra.mxu0 0.0
    %112 = vmatprep.subr.mxu0 0.0
    %113 = vmatpush1.msra.mxu0 0.0
    %114 = vmatprep.subr.mxu0 0.0
    %115 = vmatpush1.msra.mxu0 0.0
    %116 = vmatprep.subr.mxu0 0.0
    %117 = vmatpush1.msra.mxu0 0.0
    %118 = vmatprep.subr.mxu0 0.0
    %119 = vmatpush1.msra.mxu0 0.0
    %120 = vmatprep.subr.mxu0 0.0
    %121 = vmatpush1.msra.mxu0 0.0
    %122 = vmatprep.subr.mxu0 0.0
    %123 = vmatpush1.msra.mxu0 0.0
    %124 = vmatprep.subr.mxu0 0.0
    %125 = vmatpush1.msra.mxu0 0.0
    %126 = vmatprep.subr.mxu0 0.0
    %127 = vmatpush1.msra.mxu0 0.0
    %128 = vmatprep.subr.mxu0 0.0
    %129 = vmatpush1.msra.mxu0 0.0
    %130 = vmatprep.subr.mxu0 0.0
    %131 = vmatpush1.msra.mxu0 0.0
    %132 = vmatprep.subr.mxu0 0.0
    %133 = vmatpush1.msra.mxu0 0.0
    %134 = vmatprep.subr.mxu0 0.0
    %135 = vmatpush1.msra.mxu0 0.0
    %136 = vmatprep.subr.mxu0 0.0
    %137 = vmatpush1.msra.mxu0 0.0
    %138 = vmatprep.subr.mxu0 0.0
    %139 = vmatpush1.msra.mxu0 0.0
    %140 = vmatprep.subr.mxu0 0.0
    %141 = vmatpush1.msra.mxu0 0.0
    %142 = vmatprep.subr.mxu0 0.0
    %143 = vmatpush1.msra.mxu0 0.0
    %144 = vmatprep.subr.mxu0 0.0
    %145 = vmatpush1.msra.mxu0 0.0
    %146 = vmatprep.subr.mxu0 0.0
    %147 = vmatpush1.msra.mxu0 0.0
    %148 = vmatprep.mubr.f32.mxu0 0.0
    %149 = vmatmul.mubr.f32.gmra.mrb[0].mxu0 %v82
    %v150 = vpop.f32.mrb[0].mxu0
    %v151 = vadd.f32 %v63, %v150
    %v152 = vpop.f32.mrb[0].mxu0
    %v153 = vadd.f32 %v67, %v152
    %154 = vdwg.mxu0
    %155 = vmatprep.subr.mxu0 %v45
    %156 = vmatpush1.msra.mxu0 %v44
    %157 = vmatprep.subr.mxu0 %v49
    %158 = vmatpush1.msra.mxu0 %v48
    %159 = vmatprep.subr.mxu0 %v53
    %160 = vmatpush1.msra.mxu0 %v52
    %161 = vmatprep.subr.mxu0 %v57
    %162 = vmatpush1.msra.mxu0 %v56
    %163 = vmatprep.subr.mxu0 0.0
    %164 = vmatpush1.msra.mxu0 0.0
    %165 = vmatprep.subr.mxu0 0.0
    %166 = vmatpush1.msra.mxu0 0.0
    %167 = vmatprep.subr.mxu0 0.0
    %168 = vmatpush1.msra.mxu0 0.0
    %169 = vmatprep.subr.mxu0 0.0
    %170 = vmatpush1.msra.mxu0 0.0
    %171 = vmatprep.subr.mxu0 0.0
    %172 = vmatpush1.msra.mxu0 0.0
    %173 = vmatprep.subr.mxu0 0.0
    %174 = vmatpush1.msra.mxu0 0.0
    %175 = vmatprep.subr.mxu0 0.0
    %176 = vmatpush1.msra.mxu0 0.0
    %177 = vmatprep.subr.mxu0 0.0
    %178 = vmatpush1.msra.mxu0 0.0
    %179 = vmatprep.subr.mxu0 0.0
    %180 = vmatpush1.msra.mxu0 0.0
    %181 = vmatprep.subr.mxu0 0.0
    %182 = vmatpush1.msra.mxu0 0.0
    %183 = vmatprep.subr.mxu0 0.0
    %184 = vmatpush1.msra.mxu0 0.0
    %185 = vmatprep.subr.mxu0 0.0
    %186 = vmatpush1.msra.mxu0 0.0
    %187 = vmatprep.subr.mxu0 0.0
    %188 = vmatpush1.msra.mxu0 0.0
    %189 = vmatprep.subr.mxu0 0.0
    %190 = vmatpush1.msra.mxu0 0.0
    %191 = vmatprep.subr.mxu0 0.0
    %192 = vmatpush1.msra.mxu0 0.0
    %193 = vmatprep.subr.mxu0 0.0
    %194 = vmatpush1.msra.mxu0 0.0
    %195 = vmatprep.subr.mxu0 0.0
    %196 = vmatpush1.msra.mxu0 0.0
    %197 = vmatprep.subr.mxu0 0.0
    %198 = vmatpush1.msra.mxu0 0.0
    %199 = vmatprep.subr.mxu0 0.0
    %200 = vmatpush1.msra.mxu0 0.0
    %201 = vmatprep.subr.mxu0 0.0
    %202 = vmatpush1.msra.mxu0 0.0
    %203 = vmatprep.subr.mxu0 0.0
    %204 = vmatpush1.msra.mxu0 0.0
    %205 = vmatprep.subr.mxu0 0.0
    %206 = vmatpush1.msra.mxu0 0.0
    %207 = vmatprep.subr.mxu0 0.0
    %208 = vmatpush1.msra.mxu0 0.0
    %209 = vmatprep.subr.mxu0 0.0
    %210 = vmatpush1.msra.mxu0 0.0
    %211 = vmatprep.subr.mxu0 0.0
    %212 = vmatpush1.msra.mxu0 0.0
    %213 = vmatprep.subr.mxu0 0.0
    %214 = vmatpush1.msra.mxu0 0.0
    %215 = vmatprep.subr.mxu0 0.0
    %216 = vmatpush1.msra.mxu0 0.0
    %217 = vmatprep.subr.mxu0 0.0
    %218 = vmatpush1.msra.mxu0 0.0
    %219 = vmatprep.mubr.f32.mxu0 0.0
    %220 = vmatmul.mubr.f32.gmra.mrb[0].mxu0 %v82
    %v221 = vpop.f32.mrb[0].mxu0
    %v222 = vadd.f32 %v71, %v221
    %v223 = vpop.f32.mrb[0].mxu0
    %v224 = vadd.f32 %v75, %v223
    %225 = vdwg.mxu0
    %v226 = vmax.f32 %v151, 0.0
    %v227 = vmax.f32 %v153, 0.0
    %v228 = vmax.f32 %v222, 0.0
    %v229 = vmax.f32 %v224, 0.0
    %v230 = vmax.f32 %v226, %v227
    %v231 = vmax.f32 %v230, %v228
    %v232 = vmax.f32 %v231, %v229
    %233 = vst [vmem:[#allocation7] sm:$0xff] %v232
    // Predicated region
    $region22: #{tpu_custom_call.1} parent=1 // pred_check
      _
    $region23: #{tpu_custom_call.1} parent=1 // pred_check_branch
      %235 = sbr.rel (0) target = $region25
    $region24: #{tpu_custom_call.1} parent=1 // pred_region
      %s237 = ssub.s32 128, 128
      %238 = vsyncadd [#allocation4], %s237
      %s240 = sshll.u32 [#allocation7], 4
      %s241 = int_to_ptr.vmem [resolvable:$true] %s240
      %243 = dma.vmem_to_hbm [thread:$0]  %s241, 128, %s3, [#allocation4]
    $region25: #{tpu_custom_call.1} parent=1 // pred_fallthru
      _
    // Predicated region
    $region26: #{tpu_custom_call.1} parent=1 // pred_check
      _
    $region27: #{tpu_custom_call.1} parent=1 // pred_check_branch
      %245 = sbr.rel (0) target = $region29
    $region28: #{tpu_custom_call.1} parent=1 // pred_region
      %246 = dma.done [#allocation4], 128
    $region29: #{tpu_custom_call.1} parent=1 // pred_fallthru
      _
    %247 = vsyncpa [#allocation3], 1
    %248 = vsyncpa [#allocation6], 1
    %249 = vsyncpa [#allocation4], 1

</llo_original>
